<compile_context>
chip_gen: v7x
topology: tpu7x:2x2x1
jax: 0.10.0
libtpu: 0.0.40
codegen_flags: <defaults>
</compile_context>

<pallas_src>
import functools

import jax
import jax.numpy as jnp
from jax.experimental import pallas as pl
from jax.experimental.pallas import tpu as pltpu

# Padded (lane/MXU friendly) feature dims.  The input feature dim (50) is NOT
# padded: x's last block dim equals the full array dim, and Mosaic handles a
# K<128 contraction at the same MXU-pass cost.
D_H1_P = 256    # 200 -> 256
D_H2_P = 128    # 100 -> 128
D_H3_P = 128    # 25  -> 128
D_OUT_P = 128   # out -> 128 (lane-dense output, sliced outside)


def dqn_kernel(x_ref,
               w1_ref, b1_ref,
               w2_ref, b2_ref,
               w3_ref, b3_ref,
               w4_ref, b4_ref,
               o_ref,
               *, bf16_relu):
    # x tile: (TB, 50) f32 -> bf16 in-kernel; weights bf16; biases f32 (1, out).
    x = x_ref[...].astype(jnp.bfloat16)

    def relu_to_bf16(h):
        if bf16_relu:
            # bf16 VALU path (v6e/v7x): exact vs f32-first since cast is
            # monotone and cast(0) == 0; halves the vreg ops for the max.
            return jnp.maximum(h.astype(jnp.bfloat16), 0.0)
        # v4/v5e path: no bf16 VALU, do the max in f32 then cast.
        return jnp.maximum(h, 0.0).astype(jnp.bfloat16)

    # fc1 + relu   (K = 50, MXU accumulates in f32)
    h1 = jnp.dot(x, w1_ref[...], preferred_element_type=jnp.float32) + b1_ref[...]
    h1 = relu_to_bf16(h1)

    # fc2 + relu
    h2 = jnp.dot(h1, w2_ref[...], preferred_element_type=jnp.float32) + b2_ref[...]
    h2 = relu_to_bf16(h2)

    # fc3 + silu: exp and approx reciprocal both ride the (otherwise idle) EUP.
    z3 = jnp.dot(h2, w3_ref[...], preferred_element_type=jnp.float32) + b3_ref[...]
    sig = pl.reciprocal(1.0 + jnp.exp(-z3), approx=True)
    h3 = (z3 * sig).astype(jnp.bfloat16)

    # fc4 (linear), lane-dense (TB, 128) store in the output dtype (bf16).
    o_ref[...] = (jnp.dot(h3, w4_ref[...], preferred_element_type=jnp.float32)
                  + b4_ref[...]).astype(o_ref.dtype)


def _round_up(n, m):
    return (n + m - 1) // m * m


def _pad2(a, rows, cols, dtype):
    r, c = a.shape
    return jnp.pad(a.astype(dtype), ((0, rows - r), (0, cols - c)))


def _bf16_relu_ok():
    """bf16 VALU exists on v6e/v7x; fall back to f32-first relu on v4/v5 or unknown."""
    try:
        kind = jax.devices()[0].device_kind.lower()
        if "v4" in kind or "v5" in kind:
            return False
        return "tpu" in kind or "v6" in kind or "v7" in kind
    except Exception:
        return False


def _choose_tiling(B, block_b):
    """Batch tile selection (review fix): minimal padding + >=2 steps for large B."""
    ntiles = pl.cdiv(B, block_b)
    if B >= 256:
        # Enough rows that >=2 grid steps pays off: dual-TC sharding on v7x
        # and DMA/compute overlap everywhere.
        ntiles = max(ntiles, 2)
    tb = _round_up(pl.cdiv(B, ntiles), 8)
    b_pad = ntiles * tb
    return tb, b_pad


def init_raw_params(key, input_dim, output_dim):
    """PyTorch-Linear-style init. Weights stored (in, out) f32; biases (1, out) f32."""
    dims = [(input_dim, 200), (200, 100), (100, 25), (25, output_dim)]
    params = {}
    keys = jax.random.split(key, 2 * len(dims))
    for i, (din, dout) in enumerate(dims):
        bound = 1.0 / jnp.sqrt(jnp.float32(din))
        params[f"w{i + 1}"] = jax.random.uniform(
            keys[2 * i], (din, dout), jnp.float32, -bound, bound)
        params[f"b{i + 1}"] = jax.random.uniform(
            keys[2 * i + 1], (1, dout), jnp.float32, -bound, bound)
    return params


def prepare_kernel_params(raw):
    """Zero-pad to lane/MXU-friendly dims; weights -> bf16, biases stay f32.
    w1 keeps its true K (=input_dim): only its output dim is padded."""
    d_in = raw["w1"].shape[0]
    pads = [(d_in, D_H1_P), (D_H1_P, D_H2_P), (D_H2_P, D_H3_P), (D_H3_P, D_OUT_P)]
    kp = {}
    for i, (rin, rout) in enumerate(pads):
        kp[f"w{i + 1}"] = _pad2(raw[f"w{i + 1}"], rin, rout, jnp.bfloat16)
        kp[f"b{i + 1}"] = _pad2(raw[f"b{i + 1}"], 1, rout, jnp.float32)
    return kp


def dqn_forward(x, kernel_params, out_dim, *, block_b=1024, out_dtype=jnp.bfloat16):
    """x: (B, input_dim) f32. kernel_params: padded bf16/f32 params.
    Returns (B, out_dim) in out_dtype."""
    B, d_in = x.shape
    tb, b_pad = _choose_tiling(B, block_b)

    # Batch-row pad only (no host-side feature pad / cast of x).
    if b_pad != B:
        x = jnp.pad(x, ((0, b_pad - B), (0, 0)))

    args = (x,
            kernel_params["w1"], kernel_params["b1"],
            kernel_params["w2"], kernel_params["b2"],
            kernel_params["w3"], kernel_params["b3"],
            kernel_params["w4"], kernel_params["b4"])

    # Weights/biases: constant index map -> loaded once, VMEM-resident across the grid.
    const_spec = lambda a: pl.BlockSpec(a.shape, lambda i: (0, 0))
    in_specs = ([pl.BlockSpec((tb, d_in), lambda i: (i, 0))]   # last dim == full dim
                + [const_spec(a) for a in args[1:]])

    flops = 2 * b_pad * (d_in * D_H1_P + D_H1_P * D_H2_P
                         + D_H2_P * D_H3_P + D_H3_P * D_OUT_P)
    bytes_accessed = (int(x.size) * 4
                      + sum(int(a.size) * a.dtype.itemsize for a in args[1:])
                      + b_pad * D_OUT_P * jnp.dtype(out_dtype).itemsize)
    cost = pl.CostEstimate(flops=flops,
                           transcendentals=2 * b_pad * D_H3_P,
                           bytes_accessed=bytes_accessed)

    kernel = functools.partial(dqn_kernel, bf16_relu=_bf16_relu_ok())

    out_p = pl.pallas_call(
        kernel,
        out_shape=jax.ShapeDtypeStruct((b_pad, D_OUT_P), out_dtype),
        grid=(b_pad // tb,),
        in_specs=in_specs,
        out_specs=pl.BlockSpec((tb, D_OUT_P), lambda i: (i, 0)),
        compiler_params=pltpu.CompilerParams(
            dimension_semantics=("parallel",),
            vmem_limit_bytes=32 * 1024 * 1024),
        cost_estimate=cost,
    )(*args)

    # Slice padded batch rows and padded output lanes outside the kernel.
    return out_p[:B, :out_dim]


def dqn_reference(x, raw):
    h1 = jnp.maximum(x @ raw["w1"] + raw["b1"], 0.0)
    h2 = jnp.maximum(h1 @ raw["w2"] + raw["b2"], 0.0)
    z3 = h2 @ raw["w3"] + raw["b3"]
    h3 = z3 * jax.nn.sigmoid(z3)
    return h3 @ raw["w4"] + raw["b4"]


if __name__ == "__main__":
    input_dim = 50   # QNetwork_50_50
    output_dim = 4
    batch = 8

    key = jax.random.PRNGKey(0)
    k_params, k_x = jax.random.split(key)

    raw_params = init_raw_params(k_params, input_dim, output_dim)
    kernel_params = prepare_kernel_params(raw_params)
    x = jax.random.normal(k_x, (batch, input_dim), dtype=jnp.float32)

    out = dqn_forward(x, kernel_params, output_dim)
    out = jax.block_until_ready(out)

    ref = dqn_reference(x, raw_params)
    assert out.shape == (batch, output_dim)
    # bf16 matmul operands / bf16 output vs pure-f32 reference.
    err = jnp.max(jnp.abs(out.astype(jnp.float32) - ref))
    assert jnp.allclose(out.astype(jnp.float32), ref, atol=4e-2, rtol=4e-2), float(err)

    print("KERNEL_OK")
</pallas_src>

<mosaic_0001>
module attributes {stable_mosaic.version = 11 : i64} {
  func.func @dqn_kernel(%arg0: i32, %arg1: memref<8x50xf32, #tpu.memory_space<vmem>>, %arg2: memref<50x256xbf16, #tpu.memory_space<vmem>>, %arg3: memref<1x256xf32, #tpu.memory_space<vmem>>, %arg4: memref<256x128xbf16, #tpu.memory_space<vmem>>, %arg5: memref<1x128xf32, #tpu.memory_space<vmem>>, %arg6: memref<128x128xbf16, #tpu.memory_space<vmem>>, %arg7: memref<1x128xf32, #tpu.memory_space<vmem>>, %arg8: memref<128x128xbf16, #tpu.memory_space<vmem>>, %arg9: memref<1x128xf32, #tpu.memory_space<vmem>>, %arg10: memref<8x128xbf16, #tpu.memory_space<vmem>>) attributes {dimension_semantics = [#tpu.dimension_semantics<parallel>], iteration_bounds = array<i64: 1>, scalar_prefetch = 0 : i64, scratch_operands = 0 : i64, tpu.core_type = #tpu.core_type<tc>, window_params = [{transform_indices = @transform_0, window_bounds = array<i64: 8, 50>}, {pipeline_mode = #tpu.pipeline_mode<synchronous>, transform_indices = @transform_1, window_bounds = array<i64: 50, 256>}, {pipeline_mode = #tpu.pipeline_mode<synchronous>, transform_indices = @transform_2, window_bounds = array<i64: 1, 256>}, {pipeline_mode = #tpu.pipeline_mode<synchronous>, transform_indices = @transform_3, window_bounds = array<i64: 256, 128>}, {pipeline_mode = #tpu.pipeline_mode<synchronous>, transform_indices = @transform_4, window_bounds = array<i64: 1, 128>}, {pipeline_mode = #tpu.pipeline_mode<synchronous>, transform_indices = @transform_5, window_bounds = array<i64: 128, 128>}, {pipeline_mode = #tpu.pipeline_mode<synchronous>, transform_indices = @transform_6, window_bounds = array<i64: 1, 128>}, {pipeline_mode = #tpu.pipeline_mode<synchronous>, transform_indices = @transform_7, window_bounds = array<i64: 128, 128>}, {pipeline_mode = #tpu.pipeline_mode<synchronous>, transform_indices = @transform_8, window_bounds = array<i64: 1, 128>}, {transform_indices = @transform_9, window_bounds = array<i64: 8, 128>}]} {
    %c0 = arith.constant 0 : index
    %c0_0 = arith.constant 0 : index
    %0 = vector.load %arg1[%c0, %c0_0] : memref<8x50xf32, #tpu.memory_space<vmem>>, vector<8x50xf32>
    %1 = arith.truncf %0 : vector<8x50xf32> to vector<8x50xbf16>
    %c0_1 = arith.constant 0 : index
    %c0_2 = arith.constant 0 : index
    %2 = vector.load %arg2[%c0_1, %c0_2] : memref<50x256xbf16, #tpu.memory_space<vmem>>, vector<50x256xbf16>
    %cst = arith.constant dense<0.000000e+00> : vector<8x256xf32>
    %3 = tpu.matmul %1, %2, %cst {dimension_numbers = #tpu.dot_dimension_numbers<[1], [0], [0], [1], [0, 0, 1, 1], [], []>} : vector<8x50xbf16>, vector<50x256xbf16>, vector<8x256xf32> -> vector<8x256xf32>
    %c0_3 = arith.constant 0 : index
    %c0_4 = arith.constant 0 : index
    %4 = vector.load %arg3[%c0_3, %c0_4] : memref<1x256xf32, #tpu.memory_space<vmem>>, vector<1x256xf32>
    %5 = vector.broadcast %4 : vector<1x256xf32> to vector<8x256xf32>
    %6 = arith.addf %3, %5 : vector<8x256xf32>
    %cst_5 = arith.constant 0.000000e+00 : f32
    %7 = vector.broadcast %cst_5 : f32 to vector<8x256xf32>
    %8 = arith.maximumf %6, %7 : vector<8x256xf32>
    %9 = arith.truncf %8 : vector<8x256xf32> to vector<8x256xbf16>
    %c0_6 = arith.constant 0 : index
    %c0_7 = arith.constant 0 : index
    %10 = vector.load %arg4[%c0_6, %c0_7] : memref<256x128xbf16, #tpu.memory_space<vmem>>, vector<256x128xbf16>
    %cst_8 = arith.constant dense<0.000000e+00> : vector<8x128xf32>
    %11 = tpu.matmul %9, %10, %cst_8 {dimension_numbers = #tpu.dot_dimension_numbers<[1], [0], [0], [1], [0, 0, 1, 1], [], []>} : vector<8x256xbf16>, vector<256x128xbf16>, vector<8x128xf32> -> vector<8x128xf32>
    %c0_9 = arith.constant 0 : index
    %c0_10 = arith.constant 0 : index
    %12 = vector.load %arg5[%c0_9, %c0_10] : memref<1x128xf32, #tpu.memory_space<vmem>>, vector<1x128xf32>
    %13 = vector.broadcast %12 : vector<1x128xf32> to vector<8x128xf32>
    %14 = arith.addf %11, %13 : vector<8x128xf32>
    %cst_11 = arith.constant 0.000000e+00 : f32
    %15 = vector.broadcast %cst_11 : f32 to vector<8x128xf32>
    %16 = arith.maximumf %14, %15 : vector<8x128xf32>
    %17 = arith.truncf %16 : vector<8x128xf32> to vector<8x128xbf16>
    %c0_12 = arith.constant 0 : index
    %c0_13 = arith.constant 0 : index
    %18 = vector.load %arg6[%c0_12, %c0_13] : memref<128x128xbf16, #tpu.memory_space<vmem>>, vector<128x128xbf16>
    %cst_14 = arith.constant dense<0.000000e+00> : vector<8x128xf32>
    %19 = tpu.matmul %17, %18, %cst_14 {dimension_numbers = #tpu.dot_dimension_numbers<[1], [0], [0], [1], [0, 0, 1, 1], [], []>} : vector<8x128xbf16>, vector<128x128xbf16>, vector<8x128xf32> -> vector<8x128xf32>
    %c0_15 = arith.constant 0 : index
    %c0_16 = arith.constant 0 : index
    %20 = vector.load %arg7[%c0_15, %c0_16] : memref<1x128xf32, #tpu.memory_space<vmem>>, vector<1x128xf32>
    %21 = vector.broadcast %20 : vector<1x128xf32> to vector<8x128xf32>
    %22 = arith.addf %19, %21 : vector<8x128xf32>
    %cst_17 = arith.constant 0.000000e+00 : f32
    %23 = vector.broadcast %cst_17 : f32 to vector<8x128xf32>
    %24 = arith.subf %23, %22 : vector<8x128xf32>
    %25 = math.exp %24 : vector<8x128xf32>
    %cst_18 = arith.constant 1.000000e+00 : f32
    %26 = vector.broadcast %cst_18 : f32 to vector<8x128xf32>
    %27 = arith.addf %26, %25 : vector<8x128xf32>
    %28 = tpu.reciprocal %27 {approx = true} : vector<8x128xf32> -> vector<8x128xf32>
    %29 = arith.mulf %22, %28 : vector<8x128xf32>
    %30 = arith.truncf %29 : vector<8x128xf32> to vector<8x128xbf16>
    %c0_19 = arith.constant 0 : index
    %c0_20 = arith.constant 0 : index
    %31 = vector.load %arg8[%c0_19, %c0_20] : memref<128x128xbf16, #tpu.memory_space<vmem>>, vector<128x128xbf16>
    %cst_21 = arith.constant dense<0.000000e+00> : vector<8x128xf32>
    %32 = tpu.matmul %30, %31, %cst_21 {dimension_numbers = #tpu.dot_dimension_numbers<[1], [0], [0], [1], [0, 0, 1, 1], [], []>} : vector<8x128xbf16>, vector<128x128xbf16>, vector<8x128xf32> -> vector<8x128xf32>
    %c0_22 = arith.constant 0 : index
    %c0_23 = arith.constant 0 : index
    %33 = vector.load %arg9[%c0_22, %c0_23] : memref<1x128xf32, #tpu.memory_space<vmem>>, vector<1x128xf32>
    %34 = vector.broadcast %33 : vector<1x128xf32> to vector<8x128xf32>
    %35 = arith.addf %32, %34 : vector<8x128xf32>
    %36 = arith.truncf %35 : vector<8x128xf32> to vector<8x128xbf16>
    %c0_24 = arith.constant 0 : index
    %c0_25 = arith.constant 0 : index
    %37 = vector.load %arg10[%c0_24, %c0_25] : memref<8x128xbf16, #tpu.memory_space<vmem>>, vector<8x128xbf16>
    tpu.vector_store %arg10[%c0_24, %c0_25], %36 {strides = array<i32>} : memref<8x128xbf16, #tpu.memory_space<vmem>>, vector<8x128xbf16>,
    return
  }
  func.func @transform_0(%arg0: i32) -> (i32, i32) {
    %c0_i32 = arith.constant 0 : i32
    %c0_i32_0 = arith.constant 0 : i32
    return %arg0, %c0_i32 : i32, i32
  }
  func.func @transform_1(%arg0: i32) -> (i32, i32) {
    %c0_i32 = arith.constant 0 : i32
    %c0_i32_0 = arith.constant 0 : i32
    %c0_i32_1 = arith.constant 0 : i32
    return %c0_i32, %c0_i32_0 : i32, i32
  }
  func.func @transform_2(%arg0: i32) -> (i32, i32) {
    %c0_i32 = arith.constant 0 : i32
    %c0_i32_0 = arith.constant 0 : i32
    %c0_i32_1 = arith.constant 0 : i32
    return %c0_i32, %c0_i32_0 : i32, i32
  }
  func.func @transform_3(%arg0: i32) -> (i32, i32) {
    %c0_i32 = arith.constant 0 : i32
    %c0_i32_0 = arith.constant 0 : i32
    %c0_i32_1 = arith.constant 0 : i32
    return %c0_i32, %c0_i32_0 : i32, i32
  }
  func.func @transform_4(%arg0: i32) -> (i32, i32) {
    %c0_i32 = arith.constant 0 : i32
    %c0_i32_0 = arith.constant 0 : i32
    %c0_i32_1 = arith.constant 0 : i32
    return %c0_i32, %c0_i32_0 : i32, i32
  }
  func.func @transform_5(%arg0: i32) -> (i32, i32) {
    %c0_i32 = arith.constant 0 : i32
    %c0_i32_0 = arith.constant 0 : i32
    %c0_i32_1 = arith.constant 0 : i32
    return %c0_i32, %c0_i32_0 : i32, i32
  }
  func.func @transform_6(%arg0: i32) -> (i32, i32) {
    %c0_i32 = arith.constant 0 : i32
    %c0_i32_0 = arith.constant 0 : i32
    %c0_i32_1 = arith.constant 0 : i32
    return %c0_i32, %c0_i32_0 : i32, i32
  }
  func.func @transform_7(%arg0: i32) -> (i32, i32) {
    %c0_i32 = arith.constant 0 : i32
    %c0_i32_0 = arith.constant 0 : i32
    %c0_i32_1 = arith.constant 0 : i32
    return %c0_i32, %c0_i32_0 : i32, i32
  }
  func.func @transform_8(%arg0: i32) -> (i32, i32) {
    %c0_i32 = arith.constant 0 : i32
    %c0_i32_0 = arith.constant 0 : i32
    %c0_i32_1 = arith.constant 0 : i32
    return %c0_i32, %c0_i32_0 : i32, i32
  }
  func.func @transform_9(%arg0: i32) -> (i32, i32) {
    %c0_i32 = arith.constant 0 : i32
    %c0_i32_0 = arith.constant 0 : i32
    return %arg0, %c0_i32 : i32, i32
  }
}

</mosaic_0001>

<llo_original>
// kernel: tpu_custom_call.1
$region0: #{tpu_custom_call.1}
  #allocation0 [shape = 'u32[]', space=smem, size = 0x4, offset = 0x4, fixed_abs, tag = 'smem constant byte address 0x4 - core index']
  #allocation1 [shape = 'u32[144,128]{1,0:T(1,128)}', space=vmem, size = 0x12000, scoped, tag = 'internal scratch']
  %s0 = inlined_call_operand.hbm [shape: f32[8,50], index: 0, kind: input, shape index: {}]
  %s1 = inlined_call_operand.hbm [shape: bf16[50,256], index: 1, kind: input, shape index: {}]
  %s2 = inlined_call_operand.vmem [shape: f32[1,256], index: 2, kind: input, shape index: {}]
  %s3 = inlined_call_operand.hbm [shape: bf16[256,128], index: 3, kind: input, shape index: {}]
  %s4 = inlined_call_operand.vmem [shape: f32[1,128], index: 4, kind: input, shape index: {}]
  %s5 = inlined_call_operand.hbm [shape: bf16[128,128], index: 5, kind: input, shape index: {}]
  %s6 = inlined_call_operand.vmem [shape: f32[1,128], index: 6, kind: input, shape index: {}]
  %s7 = inlined_call_operand.hbm [shape: bf16[128,128], index: 7, kind: input, shape index: {}]
  %s8 = inlined_call_operand.vmem [shape: f32[1,128], index: 8, kind: input, shape index: {}]
  %s9 = inlined_call_operand.hbm [shape: bf16[8,128], index: 9, kind: output, shape index: {}]
  %s10 = sld [smem:[#allocation0]]
  $region66: #{tpu_custom_call.1} parent=0
    _
  %s12 = ssub.s32 1, %s10
  %s13 = scalar_select 0, %s12, %s10
  $region1: #{tpu_custom_call.1} parent=0
    #allocation2 [shape = 'u8[4096]{0}', space=vmem, size = 0x1000, scoped, tag = 'input window, operand 0, single buffered']
    #allocation3 [shape = 's32[1]{0}', space=sflag, size = 0x4, scoped, tag = 'scoped memory for tpu_custom_call.1']
    #allocation4 [shape = 's32[1]{0}', space=sflag, size = 0x4, scoped, tag = 'scoped memory for tpu_custom_call.1']
    #allocation5 [shape = 'u8[28672]{0}', space=vmem, size = 0x7000, scoped, tag = 'input window, operand 1, single buffered']
    #allocation6 [shape = 's32[1]{0}', space=sflag, size = 0x4, scoped, tag = 'scoped memory for tpu_custom_call.1']
    #allocation7 [shape = 'u8[65536]{0}', space=vmem, size = 0x10000, scoped, tag = 'input window, operand 3, single buffered']
    #allocation8 [shape = 'u8[32768]{0}', space=vmem, size = 0x8000, scoped, tag = 'input window, operand 5, single buffered']
    #allocation9 [shape = 's32[1]{0}', space=sflag, size = 0x4, scoped, tag = 'scoped memory for tpu_custom_call.1']
    #allocation10 [shape = 'u8[32768]{0}', space=vmem, size = 0x8000, scoped, tag = 'input window, operand 7, single buffered']
    #allocation11 [shape = 'u8[2048]{0}', space=vmem, size = 0x800, scoped, tag = 'output window, operand 0, single buffered']
    %14 = vsyncpa [#allocation3], 0
    %15 = vsyncpa [#allocation6], 0
    %16 = vsyncpa [#allocation9], 0
    %17 = vsyncpa [#allocation4], 0
    // Predicated region
    $region2: #{tpu_custom_call.1} parent=1 // pred_check
      _
    $region3: #{tpu_custom_call.1} parent=1 // pred_check_branch
      %19 = sbr.rel (0) target = $region5
    $region4: #{tpu_custom_call.1} parent=1 // pred_region
      %s21 = ssub.s32 128, 128
      %22 = vsyncadd [#allocation3], %s21
      %s24 = sshll.u32 [#allocation2], 4
      %s25 = int_to_ptr.vmem [resolvable:$true] %s24
      %27 = dma.hbm_to_vmem [thread:$0]  %s0, 128, %s25, [#allocation3]
    $region5: #{tpu_custom_call.1} parent=1 // pred_fallthru
      _
    // Predicated region
    $region6: #{tpu_custom_call.1} parent=1 // pred_check
      _
    $region7: #{tpu_custom_call.1} parent=1 // pred_check_branch
      %29 = sbr.rel (0) target = $region9
    $region8: #{tpu_custom_call.1} parent=1 // pred_region
      %s31 = ssub.s32 896, 896
      %32 = vsyncadd [#allocation6], %s31
      %s33 = sshll.u32 [#allocation5], 4
      %s34 = int_to_ptr.vmem [resolvable:$true] %s33
      %39 = dma.hbm_to_vmem [thread:$0]  %s1, 896, %s34, [#allocation6], 128, 128, 8
    $region9: #{tpu_custom_call.1} parent=1 // pred_fallthru
      _
    // Predicated region
    $region10: #{tpu_custom_call.1} parent=1 // pred_check
      _
    $region11: #{tpu_custom_call.1} parent=1 // pred_check_branch
      %41 = sbr.rel (0) target = $region13
    $region12: #{tpu_custom_call.1} parent=1 // pred_region
      _
    $region13: #{tpu_custom_call.1} parent=1 // pred_fallthru
      _
    // Predicated region
    $region14: #{tpu_custom_call.1} parent=1 // pred_check
      _
    $region15: #{tpu_custom_call.1} parent=1 // pred_check_branch
      %43 = sbr.rel (0) target = $region17
    $region16: #{tpu_custom_call.1} parent=1 // pred_region
      %s45 = ssub.s32 2048, 2048
      %46 = vsyncadd [#allocation6], %s45
      %s47 = sshll.u32 [#allocation7], 4
      %s48 = int_to_ptr.vmem [resolvable:$true] %s47
      %53 = dma.hbm_to_vmem [thread:$0]  %s3, 2048, %s48, [#allocation6], 64, 64, 4
    $region17: #{tpu_custom_call.1} parent=1 // pred_fallthru
      _
    // Predicated region
    $region18: #{tpu_custom_call.1} parent=1 // pred_check
      _
    $region19: #{tpu_custom_call.1} parent=1 // pred_check_branch
      %55 = sbr.rel (0) target = $region21
    $region20: #{tpu_custom_call.1} parent=1 // pred_region
      _
    $region21: #{tpu_custom_call.1} parent=1 // pred_fallthru
      _
    // Predicated region
    $region22: #{tpu_custom_call.1} parent=1 // pred_check
      _
    $region23: #{tpu_custom_call.1} parent=1 // pred_check_branch
      %57 = sbr.rel (0) target = $region25
    $region24: #{tpu_custom_call.1} parent=1 // pred_region
      %s59 = ssub.s32 1024, 1024
      %60 = vsyncadd [#allocation9], %s59
      %s61 = sshll.u32 [#allocation8], 4
      %s62 = int_to_ptr.vmem [resolvable:$true] %s61
      %67 = dma.hbm_to_vmem [thread:$0]  %s5, 1024, %s62, [#allocation9], 64, 64, 4
    $region25: #{tpu_custom_call.1} parent=1 // pred_fallthru
      _
    // Predicated region
    $region26: #{tpu_custom_call.1} parent=1 // pred_check
      _
    $region27: #{tpu_custom_call.1} parent=1 // pred_check_branch
      %69 = sbr.rel (0) target = $region29
    $region28: #{tpu_custom_call.1} parent=1 // pred_region
      _
    $region29: #{tpu_custom_call.1} parent=1 // pred_fallthru
      _
    // Predicated region
    $region30: #{tpu_custom_call.1} parent=1 // pred_check
      _
    $region31: #{tpu_custom_call.1} parent=1 // pred_check_branch
      %71 = sbr.rel (0) target = $region33
    $region32: #{tpu_custom_call.1} parent=1 // pred_region
      %s73 = ssub.s32 1024, 1024
      %74 = vsyncadd [#allocation9], %s73
      %s75 = sshll.u32 [#allocation10], 4
      %s76 = int_to_ptr.vmem [resolvable:$true] %s75
      %81 = dma.hbm_to_vmem [thread:$0]  %s7, 1024, %s76, [#allocation9], 64, 64, 4
    $region33: #{tpu_custom_call.1} parent=1 // pred_fallthru
      _
    // Predicated region
    $region34: #{tpu_custom_call.1} parent=1 // pred_check
      _
    $region35: #{tpu_custom_call.1} parent=1 // pred_check_branch
      %83 = sbr.rel (0) target = $region37
    $region36: #{tpu_custom_call.1} parent=1 // pred_region
      _
    $region37: #{tpu_custom_call.1} parent=1 // pred_fallthru
      _
    // Predicated region
    $region38: #{tpu_custom_call.1} parent=1 // pred_check
      _
    $region39: #{tpu_custom_call.1} parent=1 // pred_check_branch
      %85 = sbr.rel (0) target = $region41
    $region40: #{tpu_custom_call.1} parent=1 // pred_region
      %86 = dma.done [#allocation3], 128
    $region41: #{tpu_custom_call.1} parent=1 // pred_fallthru
      _
    // Predicated region
    $region42: #{tpu_custom_call.1} parent=1 // pred_check
      _
    $region43: #{tpu_custom_call.1} parent=1 // pred_check_branch
      %88 = sbr.rel (0) target = $region45
    $region44: #{tpu_custom_call.1} parent=1 // pred_region
      %89 = dma.done [#allocation6], 896
    $region45: #{tpu_custom_call.1} parent=1 // pred_fallthru
      _
    // Predicated region
    $region46: #{tpu_custom_call.1} parent=1 // pred_check
      _
    $region47: #{tpu_custom_call.1} parent=1 // pred_check_branch
      %91 = sbr.rel (0) target = $region49
    $region48: #{tpu_custom_call.1} parent=1 // pred_region
      %92 = dma.done [#allocation6], 2048
    $region49: #{tpu_custom_call.1} parent=1 // pred_fallthru
      _
    // Predicated region
    $region50: #{tpu_custom_call.1} parent=1 // pred_check
      _
    $region51: #{tpu_custom_call.1} parent=1 // pred_check_branch
      %94 = sbr.rel (0) target = $region53
    $region52: #{tpu_custom_call.1} parent=1 // pred_region
      %95 = dma.done [#allocation9], 1024
    $region53: #{tpu_custom_call.1} parent=1 // pred_fallthru
      _
    // Predicated region
    $region54: #{tpu_custom_call.1} parent=1 // pred_check
      _
    $region55: #{tpu_custom_call.1} parent=1 // pred_check_branch
      %97 = sbr.rel (0) target = $region57
    $region56: #{tpu_custom_call.1} parent=1 // pred_region
      %98 = dma.done [#allocation9], 1024
    $region57: #{tpu_custom_call.1} parent=1 // pred_fallthru
      _
    %v100 = vld [vmem:[#allocation2] sm:$0xff]
    %v101 = vpack.c.bf16 %v100, %v100
    %v102 = vld [vmem:[#allocation5] sm:$0xff]
    %v103 = vld [vmem:[#allocation5 + $0x8] sm:$0xff]
    %v104 = vld [vmem:[#allocation5 + $0x10] sm:$0xff]
    %v105 = vld [vmem:[#allocation5 + $0x18] sm:$0xff]
    %v106 = vld [vmem:[#allocation5 + $0x20] sm:$0xff]
    %v107 = vld [vmem:[#allocation5 + $0x28] sm:$0xff]
    %v108 = vld [vmem:[#allocation5 + $0x30] sm:$0x11]
    %v109 = vld [vmem:[%s2] sm:$0x3]
    %v111 = vlaneseq
    %v112 = vshrl.u32 %v111, 7
    %v113 = vsub.s32 0, %v112
    %v114 = vrot.slane %v109, %v113
    %v115 = vlaneseq
    %v116 = vshrl.u32 %v115, 7
    %v117 = vsub.s32 1, %v116
    %v118 = vrot.slane %v109, %v117
    %v128 = vunpack.c.l.b16 %v102
    %v129 = vunpack.c.h.b16 %v102
    %v130 = vunpack.c.l.b16 %v103
    %v131 = vunpack.c.h.b16 %v103
    %v132 = vunpack.c.l.b16 %v104
    %v133 = vunpack.c.h.b16 %v104
    %v134 = vunpack.c.l.b16 %v105
    %v135 = vunpack.c.h.b16 %v105
    %v136 = vunpack.c.l.b16 %v106
    %v137 = vunpack.c.h.b16 %v106
    %v138 = vunpack.c.l.b16 %v107
    %v139 = vunpack.c.h.b16 %v107
    %v140 = vunpack.c.l.b16 %v108
    %v141 = vunpack.c.h.b16 %v108
    %v142 = vpack.c.b16 %v130, %v128
    %v143 = vpack.c.b16 %v131, %v129
    %v144 = vpack.c.b16 %v134, %v132
    %v145 = vpack.c.b16 %v135, %v133
    %v146 = vpack.c.b16 %v138, %v136
    %v147 = vpack.c.b16 %v139, %v137
    %v148 = vpack.c.b16 %v140, %v140
    %v149 = vpack.c.b16 %v141, %v141
    %vm156 = vcmask 408576
    %v158 = vsel %vm156, %v101, 0
    %vm160 = vcmask 1040384
    %v162 = vsel %vm160, %v148, 0
    %v165 = vsel %vm160, %v149, 0
    %167 = vmatprep.subr.bf16.mxu0 %v143
    %168 = vmatpush1.bf16.msra.mxu0 %v142
    %169 = vmatprep.subr.bf16.mxu0 %v145
    %170 = vmatpush1.bf16.msra.mxu0 %v144
    %171 = vmatprep.subr.bf16.mxu0 %v147
    %172 = vmatpush1.bf16.msra.mxu0 %v146
    %173 = vmatprep.subr.bf16.mxu0 %v165
    %174 = vmatpush1.bf16.msra.mxu0 %v162
    %175 = vmatprep.subr.bf16.mxu0 0
    %176 = vmatpush1.bf16.msra.mxu0 0
    %177 = vmatprep.subr.bf16.mxu0 0
    %178 = vmatpush1.bf16.msra.mxu0 0
    %179 = vmatprep.subr.bf16.mxu0 0
    %180 = vmatpush1.bf16.msra.mxu0 0
    %181 = vmatprep.subr.bf16.mxu0 0
    %182 = vmatpush1.bf16.msra.mxu0 0
    %183 = vmatprep.subr.bf16.mxu0 0
    %184 = vmatpush1.bf16.msra.mxu0 0
    %185 = vmatprep.subr.bf16.mxu0 0
    %186 = vmatpush1.bf16.msra.mxu0 0
    %187 = vmatprep.subr.bf16.mxu0 0
    %188 = vmatpush1.bf16.msra.mxu0 0
    %189 = vmatprep.subr.bf16.mxu0 0
    %190 = vmatpush1.bf16.msra.mxu0 0
    %191 = vmatprep.subr.bf16.mxu0 0
    %192 = vmatpush1.bf16.msra.mxu0 0
    %193 = vmatprep.subr.bf16.mxu0 0
    %194 = vmatpush1.bf16.msra.mxu0 0
    %195 = vmatprep.subr.bf16.mxu0 0
    %196 = vmatpush1.bf16.msra.mxu0 0
    %197 = vmatprep.subr.bf16.mxu0 0
    %198 = vmatpush1.bf16.msra.mxu0 0
    %199 = vmatprep.mubr.bf16.mxu0 0
    %200 = vmatmul.mubr.bf16.gmra.mrb[0].mxu0 %v158
    %v201 = vpop.f32.mrb[0].mxu0
    %v202 = vadd.f32 %v114, %v201
    %v203 = vpop.f32.mrb[0].mxu0
    %v204 = vadd.f32 %v118, %v203
    %v205 = vpop.f32.mrb[0].mxu0
    %v206 = vpop.f32.mrb[0].mxu0
    %207 = vdwg.mxu0
    %v208 = vmax.f32 %v202, 0.0
    %v209 = vmax.f32 %v204, 0.0
    %v210 = vpack.c.bf16 %v208, %v208
    %v211 = vpack.c.bf16 %v209, %v209
    %v212 = vld [vmem:[#allocation7] sm:$0xf]
    %v213 = vld [vmem:[#allocation7 + $0x4] sm:$0xf]
    %v214 = vld [vmem:[#allocation7 + $0x8] sm:$0xf]
    %v215 = vld [vmem:[#allocation7 + $0xc] sm:$0xf]
    %v216 = vld [vmem:[#allocation7 + $0x10] sm:$0xf]
    %v217 = vld [vmem:[#allocation7 + $0x14] sm:$0xf]
    %v218 = vld [vmem:[#allocation7 + $0x18] sm:$0xf]
    %v219 = vld [vmem:[#allocation7 + $0x1c] sm:$0xf]
    %v220 = vld [vmem:[#allocation7 + $0x20] sm:$0xf]
    %v221 = vld [vmem:[#allocation7 + $0x24] sm:$0xf]
    %v222 = vld [vmem:[#allocation7 + $0x28] sm:$0xf]
    %v223 = vld [vmem:[#allocation7 + $0x2c] sm:$0xf]
    %v224 = vld [vmem:[#allocation7 + $0x30] sm:$0xf]
    %v225 = vld [vmem:[#allocation7 + $0x34] sm:$0xf]
    %v226 = vld [vmem:[#allocation7 + $0x38] sm:$0xf]
    %v227 = vld [vmem:[#allocation7 + $0x3c] sm:$0xf]
    %v228 = vld [vmem:[#allocation7 + $0x40] sm:$0xf]
    %v229 = vld [vmem:[#allocation7 + $0x44] sm:$0xf]
    %v230 = vld [vmem:[#allocation7 + $0x48] sm:$0xf]
    %v231 = vld [vmem:[#allocation7 + $0x4c] sm:$0xf]
    %v232 = vld [vmem:[#allocation7 + $0x50] sm:$0xf]
    %v233 = vld [vmem:[#allocation7 + $0x54] sm:$0xf]
    %v234 = vld [vmem:[#allocation7 + $0x58] sm:$0xf]
    %v235 = vld [vmem:[#allocation7 + $0x5c] sm:$0xf]
    %v236 = vld [vmem:[#allocation7 + $0x60] sm:$0xf]
    %v237 = vld [vmem:[#allocation7 + $0x64] sm:$0xf]
    %v238 = vld [vmem:[#allocation7 + $0x68] sm:$0xf]
    %v239 = vld [vmem:[#allocation7 + $0x6c] sm:$0xf]
    %v240 = vld [vmem:[#allocation7 + $0x70] sm:$0xf]
    %v241 = vld [vmem:[#allocation7 + $0x74] sm:$0xf]
    %v242 = vld [vmem:[#allocation7 + $0x78] sm:$0xf]
    %v243 = vld [vmem:[#allocation7 + $0x7c] sm:$0xf]
    %v244 = vld [vmem:[%s4] sm:$0x1]
    %v246 = vlaneseq
    %v247 = vshrl.u32 %v246, 7
    %v248 = vsub.s32 0, %v247
    %v249 = vrot.slane %v244, %v248
    %v283 = vunpack.c.l.b16 %v212
    %v284 = vunpack.c.l.b16 %v213
    %v285 = vunpack.c.l.b16 %v214
    %v286 = vunpack.c.l.b16 %v215
    %v287 = vunpack.c.l.b16 %v216
    %v288 = vunpack.c.l.b16 %v217
    %v289 = vunpack.c.l.b16 %v218
    %v290 = vunpack.c.l.b16 %v219
    %v291 = vunpack.c.l.b16 %v220
    %v292 = vunpack.c.l.b16 %v221
    %v293 = vunpack.c.l.b16 %v222
    %v294 = vunpack.c.l.b16 %v223
    %v295 = vunpack.c.l.b16 %v224
    %v296 = vunpack.c.l.b16 %v225
    %v297 = vunpack.c.l.b16 %v226
    %v298 = vunpack.c.l.b16 %v227
    %v299 = vunpack.c.l.b16 %v228
    %v300 = vunpack.c.l.b16 %v229
    %v301 = vunpack.c.l.b16 %v230
    %v302 = vunpack.c.l.b16 %v231
    %v303 = vunpack.c.l.b16 %v232
    %v304 = vunpack.c.l.b16 %v233
    %v305 = vunpack.c.l.b16 %v234
    %v306 = vunpack.c.l.b16 %v235
    %v307 = vunpack.c.l.b16 %v236
    %v308 = vunpack.c.l.b16 %v237
    %v309 = vunpack.c.l.b16 %v238
    %v310 = vunpack.c.l.b16 %v239
    %v311 = vunpack.c.l.b16 %v240
    %v312 = vunpack.c.l.b16 %v241
    %v313 = vunpack.c.l.b16 %v242
    %v314 = vunpack.c.l.b16 %v243
    %v315 = vpack.c.b16 %v284, %v283
    %v316 = vpack.c.b16 %v286, %v285
    %v317 = vpack.c.b16 %v288, %v287
    %v318 = vpack.c.b16 %v290, %v289
    %v319 = vpack.c.b16 %v292, %v291
    %v320 = vpack.c.b16 %v294, %v293
    %v321 = vpack.c.b16 %v296, %v295
    %v322 = vpack.c.b16 %v298, %v297
    %v323 = vpack.c.b16 %v300, %v299
    %v324 = vpack.c.b16 %v302, %v301
    %v325 = vpack.c.b16 %v304, %v303
    %v326 = vpack.c.b16 %v306, %v305
    %v327 = vpack.c.b16 %v308, %v307
    %v328 = vpack.c.b16 %v310, %v309
    %v329 = vpack.c.b16 %v312, %v311
    %v330 = vpack.c.b16 %v314, %v313
    %347 = vmatprep.subr.bf16.mxu0 0
    %348 = vmatpush1.bf16.msra.mxu0 %v315
    %349 = vmatprep.subr.bf16.mxu0 0
    %350 = vmatpush1.bf16.msra.mxu0 %v316
    %351 = vmatprep.subr.bf16.mxu0 0
    %352 = vmatpush1.bf16.msra.mxu0 %v317
    %353 = vmatprep.subr.bf16.mxu0 0
    %354 = vmatpush1.bf16.msra.mxu0 %v318
    %355 = vmatprep.subr.bf16.mxu0 0
    %356 = vmatpush1.bf16.msra.mxu0 %v319
    %357 = vmatprep.subr.bf16.mxu0 0
    %358 = vmatpush1.bf16.msra.mxu0 %v320
    %359 = vmatprep.subr.bf16.mxu0 0
    %360 = vmatpush1.bf16.msra.mxu0 %v321
    %361 = vmatprep.subr.bf16.mxu0 0
    %362 = vmatpush1.bf16.msra.mxu0 %v322
    %363 = vmatprep.subr.bf16.mxu0 0
    %364 = vmatpush1.bf16.msra.mxu0 %v323
    %365 = vmatprep.subr.bf16.mxu0 0
    %366 = vmatpush1.bf16.msra.mxu0 %v324
    %367 = vmatprep.subr.bf16.mxu0 0
    %368 = vmatpush1.bf16.msra.mxu0 %v325
    %369 = vmatprep.subr.bf16.mxu0 0
    %370 = vmatpush1.bf16.msra.mxu0 %v326
    %371 = vmatprep.subr.bf16.mxu0 0
    %372 = vmatpush1.bf16.msra.mxu0 %v327
    %373 = vmatprep.subr.bf16.mxu0 0
    %374 = vmatpush1.bf16.msra.mxu0 %v328
    %375 = vmatprep.subr.bf16.mxu0 0
    %376 = vmatpush1.bf16.msra.mxu0 %v329
    %377 = vmatprep.subr.bf16.mxu0 0
    %378 = vmatpush1.bf16.msra.mxu0 %v330
    %379 = vmatprep.mubr.bf16.mxu0 %v211
    %380 = vmatmul.mubr.bf16.gmra.mrb[0].mxu0 %v210
    %v381 = vpop.f32.mrb[0].mxu0
    %v382 = vadd.f32 %v249, %v381
    %v383 = vpop.f32.mrb[0].mxu0
    %v384 = vpop.f32.mrb[0].mxu0
    %v385 = vpop.f32.mrb[0].mxu0
    %386 = vdwg.mxu0
    %v387 = vmax.f32 %v382, 0.0
    %v388 = vpack.c.bf16 %v387, %v387
    %v389 = vld [vmem:[#allocation8] sm:$0xf]
    %v390 = vld [vmem:[#allocation8 + $0x4] sm:$0xf]
    %v391 = vld [vmem:[#allocation8 + $0x8] sm:$0xf]
    %v392 = vld [vmem:[#allocation8 + $0xc] sm:$0xf]
    %v393 = vld [vmem:[#allocation8 + $0x10] sm:$0xf]
    %v394 = vld [vmem:[#allocation8 + $0x14] sm:$0xf]
    %v395 = vld [vmem:[#allocation8 + $0x18] sm:$0xf]
    %v396 = vld [vmem:[#allocation8 + $0x1c] sm:$0xf]
    %v397 = vld [vmem:[#allocation8 + $0x20] sm:$0xf]
    %v398 = vld [vmem:[#allocation8 + $0x24] sm:$0xf]
    %v399 = vld [vmem:[#allocation8 + $0x28] sm:$0xf]
    %v400 = vld [vmem:[#allocation8 + $0x2c] sm:$0xf]
    %v401 = vld [vmem:[#allocation8 + $0x30] sm:$0xf]
    %v402 = vld [vmem:[#allocation8 + $0x34] sm:$0xf]
    %v403 = vld [vmem:[#allocation8 + $0x38] sm:$0xf]
    %v404 = vld [vmem:[#allocation8 + $0x3c] sm:$0xf]
    %v405 = vld [vmem:[%s6] sm:$0x1]
    %v407 = vlaneseq
    %v408 = vshrl.u32 %v407, 7
    %v409 = vsub.s32 0, %v408
    %v410 = vrot.slane %v405, %v409
    %v428 = vunpack.c.l.b16 %v389
    %v429 = vunpack.c.l.b16 %v390
    %v430 = vunpack.c.l.b16 %v391
    %v431 = vunpack.c.l.b16 %v392
    %v432 = vunpack.c.l.b16 %v393
    %v433 = vunpack.c.l.b16 %v394
    %v434 = vunpack.c.l.b16 %v395
    %v435 = vunpack.c.l.b16 %v396
    %v436 = vunpack.c.l.b16 %v397
    %v437 = vunpack.c.l.b16 %v398
    %v438 = vunpack.c.l.b16 %v399
    %v439 = vunpack.c.l.b16 %v400
    %v440 = vunpack.c.l.b16 %v401
    %v441 = vunpack.c.l.b16 %v402
    %v442 = vunpack.c.l.b16 %v403
    %v443 = vunpack.c.l.b16 %v404
    %v444 = vpack.c.b16 %v429, %v428
    %v445 = vpack.c.b16 %v431, %v430
    %v446 = vpack.c.b16 %v433, %v432
    %v447 = vpack.c.b16 %v435, %v434
    %v448 = vpack.c.b16 %v437, %v436
    %v449 = vpack.c.b16 %v439, %v438
    %v450 = vpack.c.b16 %v441, %v440
    %v451 = vpack.c.b16 %v443, %v442
    %460 = vmatprep.subr.bf16.mxu0 0
    %461 = vmatpush1.bf16.msra.mxu0 %v444
    %462 = vmatprep.subr.bf16.mxu0 0
    %463 = vmatpush1.bf16.msra.mxu0 %v445
    %464 = vmatprep.subr.bf16.mxu0 0
    %465 = vmatpush1.bf16.msra.mxu0 %v446
    %466 = vmatprep.subr.bf16.mxu0 0
    %467 = vmatpush1.bf16.msra.mxu0 %v447
    %468 = vmatprep.subr.bf16.mxu0 0
    %469 = vmatpush1.bf16.msra.mxu0 %v448
    %470 = vmatprep.subr.bf16.mxu0 0
    %471 = vmatpush1.bf16.msra.mxu0 %v449
    %472 = vmatprep.subr.bf16.mxu0 0
    %473 = vmatpush1.bf16.msra.mxu0 %v450
    %474 = vmatprep.subr.bf16.mxu0 0
    %475 = vmatpush1.bf16.msra.mxu0 %v451
    %476 = vmatprep.subr.bf16.mxu0 0
    %477 = vmatpush1.bf16.msra.mxu0 0
    %478 = vmatprep.subr.bf16.mxu0 0
    %479 = vmatpush1.bf16.msra.mxu0 0
    %480 = vmatprep.subr.bf16.mxu0 0
    %481 = vmatpush1.bf16.msra.mxu0 0
    %482 = vmatprep.subr.bf16.mxu0 0
    %483 = vmatpush1.bf16.msra.mxu0 0
    %484 = vmatprep.subr.bf16.mxu0 0
    %485 = vmatpush1.bf16.msra.mxu0 0
    %486 = vmatprep.subr.bf16.mxu0 0
    %487 = vmatpush1.bf16.msra.mxu0 0
    %488 = vmatprep.subr.bf16.mxu0 0
    %489 = vmatpush1.bf16.msra.mxu0 0
    %490 = vmatprep.subr.bf16.mxu0 0
    %491 = vmatpush1.bf16.msra.mxu0 0
    %492 = vmatprep.mubr.bf16.mxu0 0
    %493 = vmatmul.mubr.bf16.gmra.mrb[0].mxu0 %v388
    %v494 = vpop.f32.mrb[0].mxu0
    %v495 = vadd.f32 %v410, %v494
    %v496 = vpop.f32.mrb[0].mxu0
    %v497 = vpop.f32.mrb[0].mxu0
    %v498 = vpop.f32.mrb[0].mxu0
    %499 = vdwg.mxu0
    %v500 = vsub.f32 0.0, %v495
    %v501 = vmul.f32 %v500, 1.442695
    %v502 = vpow.pop %v501
    %v503 = vadd.f32 %v502, 1.0
    %v504 = vrcp.pop %v503
    %v505 = vmul.f32 %v495, %v504
    %v506 = vpack.c.bf16 %v505, %v505
    %v507 = vld [vmem:[#allocation10] sm:$0xf]
    %v508 = vld [vmem:[#allocation10 + $0x4] sm:$0xf]
    %v509 = vld [vmem:[#allocation10 + $0x8] sm:$0xf]
    %v510 = vld [vmem:[#allocation10 + $0xc] sm:$0xf]
    %v511 = vld [vmem:[#allocation10 + $0x10] sm:$0xf]
    %v512 = vld [vmem:[#allocation10 + $0x14] sm:$0xf]
    %v513 = vld [vmem:[#allocation10 + $0x18] sm:$0xf]
    %v514 = vld [vmem:[#allocation10 + $0x1c] sm:$0xf]
    %v515 = vld [vmem:[#allocation10 + $0x20] sm:$0xf]
    %v516 = vld [vmem:[#allocation10 + $0x24] sm:$0xf]
    %v517 = vld [vmem:[#allocation10 + $0x28] sm:$0xf]
    %v518 = vld [vmem:[#allocation10 + $0x2c] sm:$0xf]
    %v519 = vld [vmem:[#allocation10 + $0x30] sm:$0xf]
    %v520 = vld [vmem:[#allocation10 + $0x34] sm:$0xf]
    %v521 = vld [vmem:[#allocation10 + $0x38] sm:$0xf]
    %v522 = vld [vmem:[#allocation10 + $0x3c] sm:$0xf]
    %v523 = vld [vmem:[%s8] sm:$0x1]
    %v525 = vlaneseq
    %v526 = vshrl.u32 %v525, 7
    %v527 = vsub.s32 0, %v526
    %v528 = vrot.slane %v523, %v527
    %v546 = vunpack.c.l.b16 %v507
    %v547 = vunpack.c.l.b16 %v508
    %v548 = vunpack.c.l.b16 %v509
    %v549 = vunpack.c.l.b16 %v510
    %v550 = vunpack.c.l.b16 %v511
    %v551 = vunpack.c.l.b16 %v512
    %v552 = vunpack.c.l.b16 %v513
    %v553 = vunpack.c.l.b16 %v514
    %v554 = vunpack.c.l.b16 %v515
    %v555 = vunpack.c.l.b16 %v516
    %v556 = vunpack.c.l.b16 %v517
    %v557 = vunpack.c.l.b16 %v518
    %v558 = vunpack.c.l.b16 %v519
    %v559 = vunpack.c.l.b16 %v520
    %v560 = vunpack.c.l.b16 %v521
    %v561 = vunpack.c.l.b16 %v522
    %v562 = vpack.c.b16 %v547, %v546
    %v563 = vpack.c.b16 %v549, %v548
    %v564 = vpack.c.b16 %v551, %v550
    %v565 = vpack.c.b16 %v553, %v552
    %v566 = vpack.c.b16 %v555, %v554
    %v567 = vpack.c.b16 %v557, %v556
    %v568 = vpack.c.b16 %v559, %v558
    %v569 = vpack.c.b16 %v561, %v560
    %578 = vmatprep.subr.bf16.mxu0 0
    %579 = vmatpush1.bf16.msra.mxu0 %v562
    %580 = vmatprep.subr.bf16.mxu0 0
    %581 = vmatpush1.bf16.msra.mxu0 %v563
    %582 = vmatprep.subr.bf16.mxu0 0
    %583 = vmatpush1.bf16.msra.mxu0 %v564
    %584 = vmatprep.subr.bf16.mxu0 0
    %585 = vmatpush1.bf16.msra.mxu0 %v565
    %586 = vmatprep.subr.bf16.mxu0 0
    %587 = vmatpush1.bf16.msra.mxu0 %v566
    %588 = vmatprep.subr.bf16.mxu0 0
    %589 = vmatpush1.bf16.msra.mxu0 %v567
    %590 = vmatprep.subr.bf16.mxu0 0
    %591 = vmatpush1.bf16.msra.mxu0 %v568
    %592 = vmatprep.subr.bf16.mxu0 0
    %593 = vmatpush1.bf16.msra.mxu0 %v569
    %594 = vmatprep.subr.bf16.mxu0 0
    %595 = vmatpush1.bf16.msra.mxu0 0
    %596 = vmatprep.subr.bf16.mxu0 0
    %597 = vmatpush1.bf16.msra.mxu0 0
    %598 = vmatprep.subr.bf16.mxu0 0
    %599 = vmatpush1.bf16.msra.mxu0 0
    %600 = vmatprep.subr.bf16.mxu0 0
    %601 = vmatpush1.bf16.msra.mxu0 0
    %602 = vmatprep.subr.bf16.mxu0 0
    %603 = vmatpush1.bf16.msra.mxu0 0
    %604 = vmatprep.subr.bf16.mxu0 0
    %605 = vmatpush1.bf16.msra.mxu0 0
    %606 = vmatprep.subr.bf16.mxu0 0
    %607 = vmatpush1.bf16.msra.mxu0 0
    %608 = vmatprep.subr.bf16.mxu0 0
    %609 = vmatpush1.bf16.msra.mxu0 0
    %610 = vmatprep.mubr.bf16.mxu0 0
    %611 = vmatmul.mubr.bf16.gmra.mrb[0].mxu0 %v506
    %v612 = vpop.f32.mrb[0].mxu0
    %v613 = vadd.f32 %v528, %v612
    %v614 = vpop.f32.mrb[0].mxu0
    %v615 = vpop.f32.mrb[0].mxu0
    %v616 = vpop.f32.mrb[0].mxu0
    %617 = vdwg.mxu0
    %v618 = vpack.c.bf16 %v613, %v613
    %619 = vst [vmem:[#allocation11] sm:$0xf] %v618
    // Predicated region
    $region58: #{tpu_custom_call.1} parent=1 // pred_check
      _
    $region59: #{tpu_custom_call.1} parent=1 // pred_check_branch
      %621 = sbr.rel (0) target = $region61
    $region60: #{tpu_custom_call.1} parent=1 // pred_region
      %s623 = ssub.s32 64, 64
      %624 = vsyncadd [#allocation4], %s623
      %s626 = sshll.u32 [#allocation11], 4
      %s627 = int_to_ptr.vmem [resolvable:$true] %s626
      %629 = dma.vmem_to_hbm [thread:$0]  %s627, 64, %s9, [#allocation4]
    $region61: #{tpu_custom_call.1} parent=1 // pred_fallthru
      _
    // Predicated region
    $region62: #{tpu_custom_call.1} parent=1 // pred_check
      _
    $region63: #{tpu_custom_call.1} parent=1 // pred_check_branch
      %631 = sbr.rel (0) target = $region65
    $region64: #{tpu_custom_call.1} parent=1 // pred_region
      %632 = dma.done [#allocation4], 64
    $region65: #{tpu_custom_call.1} parent=1 // pred_fallthru
      _
    %633 = vsyncpa [#allocation3], 1
    %634 = vsyncpa [#allocation6], 1
    %635 = vsyncpa [#allocation9], 1
    %636 = vsyncpa [#allocation4], 1

</llo_original>
